<compile_context>
chip_gen: v5e
topology: v5e:2x2
jax: 0.10.0
libtpu: 0.0.40
codegen_flags: <defaults>
</compile_context>

<pallas_src>
import functools

import jax
import jax.numpy as jnp
from jax import lax
from jax.experimental import pallas as pl
from jax.experimental.pallas import tpu as pltpu

_SUBLANES = 8


def _round_up(x, m):
    return (x + m - 1) // m * m


# ----------------------------------------------------------------------------
# Pallas kernels
# ----------------------------------------------------------------------------
def _matmul_bias_act_kernel(x_ref, w_ref, b_ref, a_ref, o_ref, *, act):
    """o = act(x @ w + b) for one (TM, K) row tile.

    x_ref: (TM, K) bf16   w_ref: (K, Cout) bf16   b_ref: (1, Cout) f32
    a_ref: (1, 1) f32 in SMEM (PReLU slope)       o_ref: (TM, Cout) f32
    """
    acc = jnp.dot(x_ref[...], w_ref[...], preferred_element_type=jnp.float32)
    acc = acc + b_ref[...]                               # (1,Cout) -> (TM,Cout)
    if act == "prelu":
        alpha = a_ref[0, 0]                              # scalar path (SMEM)
        acc = jnp.where(acc >= 0.0, acc, alpha * acc)
    elif act == "sigmoid":
        acc = pl.reciprocal(1.0 + jnp.exp(-acc), approx=True)   # EUP exp + rcp
    elif act == "head":
        # Fused conv4_1 / conv4_2 head: sigmoid on lane 0 (label), identity on 1:5.
        sig = pl.reciprocal(1.0 + jnp.exp(-acc), approx=True)
        col = lax.broadcasted_iota(jnp.int32, acc.shape, 1)
        acc = jnp.where(col == 0, sig, acc)
    o_ref[...] = acc.astype(o_ref.dtype)


def _maxpool4_kernel(x_ref, o_ref):
    """x:(4, TM, C) -> o:(TM, C) = max over the 4 window taps (2x2 maxpool)."""
    m01 = jnp.maximum(x_ref[0], x_ref[1])
    m23 = jnp.maximum(x_ref[2], x_ref[3])
    o_ref[...] = jnp.maximum(m01, m23)


# ----------------------------------------------------------------------------
# Wrappers (glue: reshapes / im2col in plain JAX, compute in Pallas)
# ----------------------------------------------------------------------------
def _matmul_bias_act(x, w, b, alpha, act):
    M, K = x.shape
    _, cout = w.shape

    # Row tile: multiple of 8 (sublane rule), capped at 512 so the double-buffered
    # working set stays tiny relative to every generation's VMEM (incl. v7x 64 MiB).
    tm = min(512, _round_up(M, _SUBLANES))
    mp = _round_up(M, tm)
    if mp != M:
        x = jnp.pad(x, ((0, mp - M), (0, 0)))

    # bf16 MXU inputs, f32 epilogue / output.
    x = x.astype(jnp.bfloat16)
    w = w.astype(jnp.bfloat16)
    b2 = b.reshape(1, cout).astype(jnp.float32)
    a2 = jnp.reshape(alpha, (1, 1)).astype(jnp.float32)

    # Explicit VMEM budget: 2x (double-buffer) * (x tile + w + bias + out tile).
    vmem_bytes = 2 * (tm * K * 2 + K * cout * 2 + cout * 4 + tm * cout * 4)
    vmem_limit = int(min(64 * 1024 * 1024, max(16 * 1024 * 1024, 4 * vmem_bytes)))

    kernel = functools.partial(_matmul_bias_act_kernel, act=act)
    out = pl.pallas_call(
        kernel,
        out_shape=jax.ShapeDtypeStruct((mp, cout), jnp.float32),
        grid=(mp // tm,),
        in_specs=[
            pl.BlockSpec((tm, K), lambda i: (i, 0)),
            pl.BlockSpec((K, cout), lambda i: (0, 0)),
            pl.BlockSpec((1, cout), lambda i: (0, 0)),
            pl.BlockSpec(memory_space=pltpu.MemorySpace.SMEM),   # PReLU slope scalar
        ],
        out_specs=pl.BlockSpec((tm, cout), lambda i: (i, 0)),
        compiler_params=pltpu.CompilerParams(
            dimension_semantics=("parallel",),
            vmem_limit_bytes=vmem_limit,
        ),
    )(x, w, b2, a2)
    return out[:M]


def conv2d_pallas(x_nhwc, w4, b, alpha=None, act="none"):
    """VALID conv, stride 1.  w4: (kh, kw, Cin, Cout)."""
    n, h, w, cin = x_nhwc.shape
    kh, kw, _, cout = w4.shape
    ho, wo = h - kh + 1, w - kw + 1
    if kh == 1 and kw == 1:
        patches = x_nhwc.reshape(n * ho * wo, cin)
    else:
        # im2col (glue): patch ordering (kh, kw, cin) matches w4.reshape(kh*kw*cin, cout)
        # TODO(synk): move tap extraction into the kernel to avoid the kh*kw HBM inflation.
        cols = []
        for ih in range(kh):
            for iw in range(kw):
                cols.append(x_nhwc[:, ih:ih + ho, iw:iw + wo, :])
        patches = jnp.concatenate(cols, axis=-1).reshape(n * ho * wo, kh * kw * cin)
    w2 = w4.reshape(kh * kw * cin, cout)
    if alpha is None:
        alpha = jnp.zeros((1,), jnp.float32)
    out = _matmul_bias_act(patches, w2, b, alpha, act)
    return out.reshape(n, ho, wo, cout)


def maxpool_2x2_pallas(x_nhwc):
    n, h, w, c = x_nhwc.shape
    ho, wo = h // 2, w // 2
    # Crop odd spatial dims (PyTorch MaxPool2d(2,2) floors) before building taps.
    x = x_nhwc[:, :2 * ho, :2 * wo, :]
    xr = x.reshape(n, ho, 2, wo, 2, c)
    xr = jnp.transpose(xr, (2, 4, 0, 1, 3, 5)).reshape(4, n * ho * wo, c)

    m = n * ho * wo
    tm = min(512, _round_up(m, _SUBLANES))
    mp = _round_up(m, tm)
    if mp != m:
        xr = jnp.pad(xr, ((0, 0), (0, mp - m), (0, 0)))

    out = pl.pallas_call(
        _maxpool4_kernel,
        out_shape=jax.ShapeDtypeStruct((mp, c), x_nhwc.dtype),
        grid=(mp // tm,),
        in_specs=[pl.BlockSpec((4, tm, c), lambda i: (0, i, 0))],
        out_specs=pl.BlockSpec((tm, c), lambda i: (i, 0)),
        compiler_params=pltpu.CompilerParams(dimension_semantics=("parallel",)),
    )(xr)
    return out[:m].reshape(n, ho, wo, c)


# ----------------------------------------------------------------------------
# Parameter init (deterministic, mirrors weights_init: xavier_uniform + bias=0.1;
# nn.PReLU() keeps its default single slope of 0.25)
# ----------------------------------------------------------------------------
def _xavier_uniform(key, kh, kw, cin, cout):
    fan_in = cin * kh * kw
    fan_out = cout * kh * kw
    bound = (6.0 / (fan_in + fan_out)) ** 0.5
    return jax.random.uniform(key, (kh, kw, cin, cout), jnp.float32, -bound, bound)


def init_pnet_params(key):
    k = jax.random.split(key, 5)
    prelu = jnp.full((1,), 0.25, jnp.float32)
    return {
        "w1": _xavier_uniform(k[0], 3, 3, 3, 10), "b1": jnp.full((10,), 0.1, jnp.float32), "a1": prelu,
        "w2": _xavier_uniform(k[1], 3, 3, 10, 16), "b2": jnp.full((16,), 0.1, jnp.float32), "a2": prelu,
        "w3": _xavier_uniform(k[2], 3, 3, 16, 32), "b3": jnp.full((32,), 0.1, jnp.float32), "a3": prelu,
        "w41": _xavier_uniform(k[3], 1, 1, 32, 1), "b41": jnp.full((1,), 0.1, jnp.float32),
        "w42": _xavier_uniform(k[4], 1, 1, 32, 4), "b42": jnp.full((4,), 0.1, jnp.float32),
    }


# ----------------------------------------------------------------------------
# PNet forward (Pallas) and a pure-JAX reference for sanity checking
# ----------------------------------------------------------------------------
def pnet_forward(params, x_nchw):
    x = jnp.transpose(x_nchw, (0, 2, 3, 1)).astype(jnp.float32)   # NCHW -> NHWC
    x = conv2d_pallas(x, params["w1"], params["b1"], params["a1"], "prelu")
    x = maxpool_2x2_pallas(x)
    x = conv2d_pallas(x, params["w2"], params["b2"], params["a2"], "prelu")
    x = conv2d_pallas(x, params["w3"], params["b3"], params["a3"], "prelu")

    # Fused 1x1 heads: one matmul with Cout = 1 (label, sigmoid) + 4 (bbox, identity).
    w_head = jnp.concatenate([params["w41"], params["w42"]], axis=-1)   # (1,1,32,5)
    b_head = jnp.concatenate([params["b41"], params["b42"]], axis=0)    # (5,)
    head = conv2d_pallas(x, w_head, b_head, None, "head")
    label, bbox = head[..., :1], head[..., 1:]

    # back to NCHW like PyTorch
    return jnp.transpose(label, (0, 3, 1, 2)), jnp.transpose(bbox, (0, 3, 1, 2))


def pnet_reference(params, x_nchw):
    x = jnp.transpose(x_nchw, (0, 2, 3, 1)).astype(jnp.float32)

    def conv(v, w, b):
        y = lax.conv_general_dilated(v, w, (1, 1), "VALID",
                                     dimension_numbers=("NHWC", "HWIO", "NHWC"))
        return y + b.reshape(1, 1, 1, -1)

    def prelu(v):
        return jnp.where(v >= 0, v, 0.25 * v)

    x = prelu(conv(x, params["w1"], params["b1"]))
    x = lax.reduce_window(x, -jnp.inf, lax.max, (1, 2, 2, 1), (1, 2, 2, 1), "VALID")
    x = prelu(conv(x, params["w2"], params["b2"]))
    x = prelu(conv(x, params["w3"], params["b3"]))
    label = jax.nn.sigmoid(conv(x, params["w41"], params["b41"]))
    bbox = conv(x, params["w42"], params["b42"])
    return jnp.transpose(label, (0, 3, 1, 2)), jnp.transpose(bbox, (0, 3, 1, 2))


if __name__ == "__main__":
    key = jax.random.PRNGKey(0)
    pkey, xkey = jax.random.split(key)
    params = init_pnet_params(pkey)

    # Small NCHW input consistent with PNet (3 input channels, >= 12x12 spatial).
    x = jax.random.normal(xkey, (2, 3, 16, 16), dtype=jnp.float32)

    label, bbox = pnet_forward(params, x)
    label, bbox = jax.block_until_ready(label), jax.block_until_ready(bbox)

    assert label.shape == (2, 1, 3, 3), label.shape
    assert bbox.shape == (2, 4, 3, 3), bbox.shape

    # Sanity check against a pure-JAX f32 reference.
    # Loose tolerance: MXU inputs are bf16 and the sigmoid uses the approx EUP reciprocal.
    ref_label, ref_bbox = pnet_reference(params, x)
    assert jnp.allclose(label, ref_label, atol=5e-2, rtol=5e-2)
    assert jnp.allclose(bbox, ref_bbox, atol=5e-2, rtol=5e-2)

    print("KERNEL_OK")
</pallas_src>

<mosaic_0001>
module attributes {stable_mosaic.version = 11 : i64} {
  func.func @_matmul_bias_act_kernel(%arg0: i32, %arg1: memref<392x27xbf16, #tpu.memory_space<vmem>>, %arg2: memref<27x10xbf16, #tpu.memory_space<vmem>>, %arg3: memref<1x10xf32, #tpu.memory_space<vmem>>, %arg4: memref<1x1xf32, #tpu.memory_space<smem>>, %arg5: memref<392x10xf32, #tpu.memory_space<vmem>>) attributes {dimension_semantics = [#tpu.dimension_semantics<parallel>], iteration_bounds = array<i64: 1>, scalar_prefetch = 0 : i64, scratch_operands = 0 : i64, tpu.core_type = #tpu.core_type<tc>, window_params = [{transform_indices = @transform_0, window_bounds = array<i64: 392, 27>}, {pipeline_mode = #tpu.pipeline_mode<synchronous>, transform_indices = @transform_1, window_bounds = array<i64: 27, 10>}, {pipeline_mode = #tpu.pipeline_mode<synchronous>, transform_indices = @transform_2, window_bounds = array<i64: 1, 10>}, {transform_indices = @transform_3, window_bounds = array<i64: 1, 1>}, {transform_indices = @transform_4, window_bounds = array<i64: 392, 10>}]} {
    %c0 = arith.constant 0 : index
    %c0_0 = arith.constant 0 : index
    %0 = vector.load %arg1[%c0, %c0_0] : memref<392x27xbf16, #tpu.memory_space<vmem>>, vector<392x27xbf16>
    %c0_1 = arith.constant 0 : index
    %c0_2 = arith.constant 0 : index
    %1 = vector.load %arg2[%c0_1, %c0_2] : memref<27x10xbf16, #tpu.memory_space<vmem>>, vector<27x10xbf16>
    %cst = arith.constant dense<0.000000e+00> : vector<392x10xf32>
    %2 = tpu.matmul %0, %1, %cst {dimension_numbers = #tpu.dot_dimension_numbers<[1], [0], [0], [1], [0, 0, 1, 1], [], []>} : vector<392x27xbf16>, vector<27x10xbf16>, vector<392x10xf32> -> vector<392x10xf32>
    %c0_3 = arith.constant 0 : index
    %c0_4 = arith.constant 0 : index
    %3 = vector.load %arg3[%c0_3, %c0_4] : memref<1x10xf32, #tpu.memory_space<vmem>>, vector<1x10xf32>
    %4 = vector.broadcast %3 : vector<1x10xf32> to vector<392x10xf32>
    %5 = arith.addf %2, %4 : vector<392x10xf32>
    %c0_5 = arith.constant 0 : index
    %c0_6 = arith.constant 0 : index
    %6 = memref.load %arg4[%c0_5, %c0_6] : memref<1x1xf32, #tpu.memory_space<smem>>
    %cst_7 = arith.constant 0.000000e+00 : f32
    %7 = vector.broadcast %cst_7 : f32 to vector<392x10xf32>
    %8 = arith.cmpf oge, %5, %7 : vector<392x10xf32>
    %9 = vector.broadcast %6 : f32 to vector<392x10xf32>
    %10 = arith.mulf %9, %5 : vector<392x10xf32>
    %11 = arith.select %8, %5, %10 : vector<392x10xi1>, vector<392x10xf32>
    %c0_8 = arith.constant 0 : index
    %c0_9 = arith.constant 0 : index
    %12 = vector.load %arg5[%c0_8, %c0_9] : memref<392x10xf32, #tpu.memory_space<vmem>>, vector<392x10xf32>
    tpu.vector_store %arg5[%c0_8, %c0_9], %11 {strides = array<i32>} : memref<392x10xf32, #tpu.memory_space<vmem>>, vector<392x10xf32>,
    return
  }
  func.func @transform_0(%arg0: i32) -> (i32, i32) {
    %c0_i32 = arith.constant 0 : i32
    %c0_i32_0 = arith.constant 0 : i32
    return %arg0, %c0_i32 : i32, i32
  }
  func.func @transform_1(%arg0: i32) -> (i32, i32) {
    %c0_i32 = arith.constant 0 : i32
    %c0_i32_0 = arith.constant 0 : i32
    %c0_i32_1 = arith.constant 0 : i32
    return %c0_i32, %c0_i32_0 : i32, i32
  }
  func.func @transform_2(%arg0: i32) -> (i32, i32) {
    %c0_i32 = arith.constant 0 : i32
    %c0_i32_0 = arith.constant 0 : i32
    %c0_i32_1 = arith.constant 0 : i32
    return %c0_i32, %c0_i32_0 : i32, i32
  }
  func.func @transform_3(%arg0: i32) -> (i32, i32) {
    %c0_i32 = arith.constant 0 : i32
    %c0_i32_0 = arith.constant 0 : i32
    %c0_i32_1 = arith.constant 0 : i32
    return %c0_i32, %c0_i32_0 : i32, i32
  }
  func.func @transform_4(%arg0: i32) -> (i32, i32) {
    %c0_i32 = arith.constant 0 : i32
    %c0_i32_0 = arith.constant 0 : i32
    return %arg0, %c0_i32 : i32, i32
  }
}

</mosaic_0001>

<llo_original>
// kernel: tpu_custom_call.1
$region0: #{tpu_custom_call.1}
  #allocation0 [shape = 'u32[]', space=smem, size = 0x4, offset = 0x4, fixed_abs, tag = 'smem constant byte address 0x4 - core index']
  #allocation1 [shape = 'u32[72,128]{1,0:T(1,128)}', space=vmem, size = 0x9000, scoped, tag = 'internal scratch']
  #allocation2 [shape = 'f32[1,1]{1,0:T(1,128)S(6)}', space=smem, size = 0x200, scoped, tag = 'scoped memory for tpu_custom_call.1']
  %s0 = inlined_call_operand.vmem [shape: bf16[392,27], index: 0, kind: input, shape index: {}]
  %s1 = inlined_call_operand.vmem [shape: bf16[27,10], index: 1, kind: input, shape index: {}]
  %s2 = inlined_call_operand.vmem [shape: f32[1,10], index: 2, kind: input, shape index: {}]
  %s3 = inlined_call_operand.<no memory space> [shape: f32[1,1], index: 3, kind: input, shape index: {}]
  %s4 = inlined_call_operand.vmem [shape: f32[392,10], index: 4, kind: output, shape index: {}]
  %s5 = sld [smem:[#allocation0]]
  $region26: #{tpu_custom_call.1} parent=0
    _
  %s7 = ssub.s32 1, %s5
  %s8 = scalar_select 0, %s7, %s5
  %9 = sst [smem:[#allocation2]] %s3
  // Predicated region
  $region2: #{tpu_custom_call.1} parent=0 // pred_check
    _
  $region3: #{tpu_custom_call.1} parent=0 // pred_check_branch
    %11 = sbr.rel (0) target = $region5
  $region4: #{tpu_custom_call.1} parent=0 // pred_region
    _
  $region5: #{tpu_custom_call.1} parent=0 // pred_fallthru
    _
  // Predicated region
  $region6: #{tpu_custom_call.1} parent=0 // pred_check
    _
  $region7: #{tpu_custom_call.1} parent=0 // pred_check_branch
    %13 = sbr.rel (0) target = $region9
  $region8: #{tpu_custom_call.1} parent=0 // pred_region
    _
  $region9: #{tpu_custom_call.1} parent=0 // pred_fallthru
    _
  // Predicated region
  $region10: #{tpu_custom_call.1} parent=0 // pred_check
    _
  $region11: #{tpu_custom_call.1} parent=0 // pred_check_branch
    %15 = sbr.rel (0) target = $region13
  $region12: #{tpu_custom_call.1} parent=0 // pred_region
    _
  $region13: #{tpu_custom_call.1} parent=0 // pred_fallthru
    _
  // Predicated region
  $region14: #{tpu_custom_call.1} parent=0 // pred_check
    _
  $region15: #{tpu_custom_call.1} parent=0 // pred_check_branch
    %17 = sbr.rel (0) target = $region17
  $region16: #{tpu_custom_call.1} parent=0 // pred_region
    _
  $region17: #{tpu_custom_call.1} parent=0 // pred_fallthru
    _
  %v19 = vld [vmem:[%s0] sm:$0xf]
  %v20 = vld [vmem:[%s0 + $0x4] sm:$0xf]
  %v21 = vld [vmem:[%s0 + $0x8] sm:$0xf]
  %v22 = vld [vmem:[%s0 + $0xc] sm:$0xf]
  %v23 = vld [vmem:[%s0 + $0x10] sm:$0xf]
  %v24 = vld [vmem:[%s0 + $0x14] sm:$0xf]
  %v25 = vld [vmem:[%s0 + $0x18] sm:$0xf]
  %v26 = vld [vmem:[%s0 + $0x1c] sm:$0xf]
  %v27 = vld [vmem:[%s0 + $0x20] sm:$0xf]
  %v28 = vld [vmem:[%s0 + $0x24] sm:$0xf]
  %v29 = vld [vmem:[%s0 + $0x28] sm:$0xf]
  %v30 = vld [vmem:[%s0 + $0x2c] sm:$0xf]
  %v31 = vld [vmem:[%s0 + $0x30] sm:$0xf]
  %v32 = vld [vmem:[%s0 + $0x34] sm:$0xf]
  %v33 = vld [vmem:[%s0 + $0x38] sm:$0xf]
  %v34 = vld [vmem:[%s0 + $0x3c] sm:$0xf]
  %v35 = vld [vmem:[%s0 + $0x40] sm:$0xf]
  %v36 = vld [vmem:[%s0 + $0x44] sm:$0xf]
  %v37 = vld [vmem:[%s0 + $0x48] sm:$0xf]
  %v38 = vld [vmem:[%s0 + $0x4c] sm:$0xf]
  %v39 = vld [vmem:[%s0 + $0x50] sm:$0xf]
  %v40 = vld [vmem:[%s0 + $0x54] sm:$0xf]
  %v41 = vld [vmem:[%s0 + $0x58] sm:$0xf]
  %v42 = vld [vmem:[%s0 + $0x5c] sm:$0xf]
  %v43 = vld [vmem:[%s0 + $0x60] sm:$0xf]
  %v44 = vld [vmem:[%s0 + $0x64] sm:$0xf]
  %v45 = vld [vmem:[%s0 + $0x68] sm:$0xf]
  %v46 = vld [vmem:[%s0 + $0x6c] sm:$0xf]
  %v47 = vld [vmem:[%s0 + $0x70] sm:$0xf]
  %v48 = vld [vmem:[%s0 + $0x74] sm:$0xf]
  %v49 = vld [vmem:[%s0 + $0x78] sm:$0xf]
  %v50 = vld [vmem:[%s0 + $0x7c] sm:$0xf]
  %v51 = vld [vmem:[%s0 + $0x80] sm:$0xf]
  %v52 = vld [vmem:[%s0 + $0x84] sm:$0xf]
  %v53 = vld [vmem:[%s0 + $0x88] sm:$0xf]
  %v54 = vld [vmem:[%s0 + $0x8c] sm:$0xf]
  %v55 = vld [vmem:[%s0 + $0x90] sm:$0xf]
  %v56 = vld [vmem:[%s0 + $0x94] sm:$0xf]
  %v57 = vld [vmem:[%s0 + $0x98] sm:$0xf]
  %v58 = vld [vmem:[%s0 + $0x9c] sm:$0xf]
  %v59 = vld [vmem:[%s0 + $0xa0] sm:$0xf]
  %v60 = vld [vmem:[%s0 + $0xa4] sm:$0xf]
  %v61 = vld [vmem:[%s0 + $0xa8] sm:$0xf]
  %v62 = vld [vmem:[%s0 + $0xac] sm:$0xf]
  %v63 = vld [vmem:[%s0 + $0xb0] sm:$0xf]
  %v64 = vld [vmem:[%s0 + $0xb4] sm:$0xf]
  %v65 = vld [vmem:[%s0 + $0xb8] sm:$0xf]
  %v66 = vld [vmem:[%s0 + $0xbc] sm:$0xf]
  %v67 = vld [vmem:[%s0 + $0xc0] sm:$0xf]
  %v68 = vld [vmem:[%s1] sm:$0xf]
  %v69 = vld [vmem:[%s1 + $0x4] sm:$0xf]
  %v70 = vld [vmem:[%s1 + $0x8] sm:$0xf]
  %v71 = vld [vmem:[%s1 + $0xc] sm:$0x3]
  %v72 = vld [vmem:[%s2] sm:$0x1]
  %v74 = vperm.slane %v72, 0
  %v125 = vunpack.c.l.b16 %v19
  %v126 = vunpack.c.l.b16 %v20
  %v127 = vunpack.c.l.b16 %v21
  %v128 = vunpack.c.l.b16 %v22
  %v129 = vunpack.c.l.b16 %v23
  %v130 = vunpack.c.l.b16 %v24
  %v131 = vunpack.c.l.b16 %v25
  %v132 = vunpack.c.l.b16 %v26
  %v133 = vunpack.c.l.b16 %v27
  %v134 = vunpack.c.l.b16 %v28
  %v135 = vunpack.c.l.b16 %v29
  %v136 = vunpack.c.l.b16 %v30
  %v137 = vunpack.c.l.b16 %v31
  %v138 = vunpack.c.l.b16 %v32
  %v139 = vunpack.c.l.b16 %v33
  %v140 = vunpack.c.l.b16 %v34
  %v141 = vunpack.c.l.b16 %v35
  %v142 = vunpack.c.l.b16 %v36
  %v143 = vunpack.c.l.b16 %v37
  %v144 = vunpack.c.l.b16 %v38
  %v145 = vunpack.c.l.b16 %v39
  %v146 = vunpack.c.l.b16 %v40
  %v147 = vunpack.c.l.b16 %v41
  %v148 = vunpack.c.l.b16 %v42
  %v149 = vunpack.c.l.b16 %v43
  %v150 = vunpack.c.l.b16 %v44
  %v151 = vunpack.c.l.b16 %v45
  %v152 = vunpack.c.l.b16 %v46
  %v153 = vunpack.c.l.b16 %v47
  %v154 = vunpack.c.l.b16 %v48
  %v155 = vunpack.c.l.b16 %v49
  %v156 = vunpack.c.l.b16 %v50
  %v157 = vunpack.c.l.b16 %v51
  %v158 = vunpack.c.l.b16 %v52
  %v159 = vunpack.c.l.b16 %v53
  %v160 = vunpack.c.l.b16 %v54
  %v161 = vunpack.c.l.b16 %v55
  %v162 = vunpack.c.l.b16 %v56
  %v163 = vunpack.c.l.b16 %v57
  %v164 = vunpack.c.l.b16 %v58
  %v165 = vunpack.c.l.b16 %v59
  %v166 = vunpack.c.l.b16 %v60
  %v167 = vunpack.c.l.b16 %v61
  %v168 = vunpack.c.l.b16 %v62
  %v169 = vunpack.c.l.b16 %v63
  %v170 = vunpack.c.l.b16 %v64
  %v171 = vunpack.c.l.b16 %v65
  %v172 = vunpack.c.l.b16 %v66
  %v173 = vunpack.c.l.b16 %v67
  %v174 = vpack.c.b16 %v126, %v125
  %v175 = vpack.c.b16 %v128, %v127
  %v176 = vpack.c.b16 %v130, %v129
  %v177 = vpack.c.b16 %v132, %v131
  %v178 = vpack.c.b16 %v134, %v133
  %v179 = vpack.c.b16 %v136, %v135
  %v180 = vpack.c.b16 %v138, %v137
  %v181 = vpack.c.b16 %v140, %v139
  %v182 = vpack.c.b16 %v142, %v141
  %v183 = vpack.c.b16 %v144, %v143
  %v184 = vpack.c.b16 %v146, %v145
  %v185 = vpack.c.b16 %v148, %v147
  %v186 = vpack.c.b16 %v150, %v149
  %v187 = vpack.c.b16 %v152, %v151
  %v188 = vpack.c.b16 %v154, %v153
  %v189 = vpack.c.b16 %v156, %v155
  %v190 = vpack.c.b16 %v158, %v157
  %v191 = vpack.c.b16 %v160, %v159
  %v192 = vpack.c.b16 %v162, %v161
  %v193 = vpack.c.b16 %v164, %v163
  %v194 = vpack.c.b16 %v166, %v165
  %v195 = vpack.c.b16 %v168, %v167
  %v196 = vpack.c.b16 %v170, %v169
  %v197 = vpack.c.b16 %v172, %v171
  %v198 = vpack.c.b16 %v173, %v173
  %v203 = vunpack.c.l.b16 %v68
  %v204 = vunpack.c.l.b16 %v69
  %v205 = vunpack.c.l.b16 %v70
  %v206 = vunpack.c.l.b16 %v71
  %v207 = vpack.c.b16 %v204, %v203
  %v208 = vpack.c.b16 %v206, %v205
  %vm210 = vcmask 220160
  %v212 = vsel %vm210, %v174, 0
  %v215 = vsel %vm210, %v175, 0
  %v218 = vsel %vm210, %v176, 0
  %v221 = vsel %vm210, %v177, 0
  %v224 = vsel %vm210, %v178, 0
  %v227 = vsel %vm210, %v179, 0
  %v230 = vsel %vm210, %v180, 0
  %v233 = vsel %vm210, %v181, 0
  %v236 = vsel %vm210, %v182, 0
  %v239 = vsel %vm210, %v183, 0
  %v242 = vsel %vm210, %v184, 0
  %v245 = vsel %vm210, %v185, 0
  %v248 = vsel %vm210, %v186, 0
  %v251 = vsel %vm210, %v187, 0
  %v254 = vsel %vm210, %v188, 0
  %v257 = vsel %vm210, %v189, 0
  %v260 = vsel %vm210, %v190, 0
  %v263 = vsel %vm210, %v191, 0
  %v266 = vsel %vm210, %v192, 0
  %v269 = vsel %vm210, %v193, 0
  %v272 = vsel %vm210, %v194, 0
  %v275 = vsel %vm210, %v195, 0
  %v278 = vsel %vm210, %v196, 0
  %v281 = vsel %vm210, %v197, 0
  %v284 = vsel %vm210, %v198, 0
  %vm286 = vcmask 1044480
  %vm287 = vcmask 1045504
  %v288 = vsel %vm286, 4294967295, 65535
  %v289 = vsel %vm287, %v288, 0
  %v291 = vand.u32 %v208, %v289
  %293 = vmatpush.bf16.msra.mxu0 0
  %294 = vmatpush.bf16.msra.mxu0 0
  %295 = vmatpush.bf16.msra.mxu0 0
  %296 = vmatpush.bf16.msra.mxu0 0
  %297 = vmatpush.bf16.msra.mxu0 0
  %298 = vmatpush.bf16.msra.mxu0 0
  %299 = vmatpush.bf16.msra.mxu0 %v291
  %300 = vmatpush.bf16.msra.mxu0 %v207
  %301 = vmatmul.bf16.gmra.mxu0 %v212
  %v302 = vpop.f32.mrf.mxu0
  %v303 = vadd.f32 %v74, %v302
  %v304 = vpop.f32.mrf.mxu0
  %v305 = vadd.f32 %v74, %v304
  %306 = vmatmul.bf16.gmra.mxu0 %v215
  %v307 = vpop.f32.mrf.mxu0
  %v308 = vadd.f32 %v74, %v307
  %v309 = vpop.f32.mrf.mxu0
  %v310 = vadd.f32 %v74, %v309
  %311 = vmatmul.bf16.gmra.mxu0 %v218
  %v312 = vpop.f32.mrf.mxu0
  %v313 = vadd.f32 %v74, %v312
  %v314 = vpop.f32.mrf.mxu0
  %v315 = vadd.f32 %v74, %v314
  %316 = vmatmul.bf16.gmra.mxu0 %v221
  %v317 = vpop.f32.mrf.mxu0
  %v318 = vadd.f32 %v74, %v317
  %v319 = vpop.f32.mrf.mxu0
  %v320 = vadd.f32 %v74, %v319
  %321 = vmatmul.bf16.gmra.mxu0 %v224
  %v322 = vpop.f32.mrf.mxu0
  %v323 = vadd.f32 %v74, %v322
  %v324 = vpop.f32.mrf.mxu0
  %v325 = vadd.f32 %v74, %v324
  %326 = vmatmul.bf16.gmra.mxu0 %v227
  %v327 = vpop.f32.mrf.mxu0
  %v328 = vadd.f32 %v74, %v327
  %v329 = vpop.f32.mrf.mxu0
  %v330 = vadd.f32 %v74, %v329
  %331 = vmatmul.bf16.gmra.mxu0 %v230
  %v332 = vpop.f32.mrf.mxu0
  %v333 = vadd.f32 %v74, %v332
  %v334 = vpop.f32.mrf.mxu0
  %v335 = vadd.f32 %v74, %v334
  %336 = vmatmul.bf16.gmra.mxu0 %v233
  %v337 = vpop.f32.mrf.mxu0
  %v338 = vadd.f32 %v74, %v337
  %v339 = vpop.f32.mrf.mxu0
  %v340 = vadd.f32 %v74, %v339
  %341 = vmatmul.bf16.gmra.mxu0 %v236
  %v342 = vpop.f32.mrf.mxu0
  %v343 = vadd.f32 %v74, %v342
  %v344 = vpop.f32.mrf.mxu0
  %v345 = vadd.f32 %v74, %v344
  %346 = vmatmul.bf16.gmra.mxu0 %v239
  %v347 = vpop.f32.mrf.mxu0
  %v348 = vadd.f32 %v74, %v347
  %v349 = vpop.f32.mrf.mxu0
  %v350 = vadd.f32 %v74, %v349
  %351 = vmatmul.bf16.gmra.mxu0 %v242
  %v352 = vpop.f32.mrf.mxu0
  %v353 = vadd.f32 %v74, %v352
  %v354 = vpop.f32.mrf.mxu0
  %v355 = vadd.f32 %v74, %v354
  %356 = vmatmul.bf16.gmra.mxu0 %v245
  %v357 = vpop.f32.mrf.mxu0
  %v358 = vadd.f32 %v74, %v357
  %v359 = vpop.f32.mrf.mxu0
  %v360 = vadd.f32 %v74, %v359
  %361 = vmatmul.bf16.gmra.mxu0 %v248
  %v362 = vpop.f32.mrf.mxu0
  %v363 = vadd.f32 %v74, %v362
  %v364 = vpop.f32.mrf.mxu0
  %v365 = vadd.f32 %v74, %v364
  %366 = vmatmul.bf16.gmra.mxu0 %v251
  %v367 = vpop.f32.mrf.mxu0
  %v368 = vadd.f32 %v74, %v367
  %v369 = vpop.f32.mrf.mxu0
  %v370 = vadd.f32 %v74, %v369
  %371 = vmatmul.bf16.gmra.mxu0 %v254
  %v372 = vpop.f32.mrf.mxu0
  %v373 = vadd.f32 %v74, %v372
  %v374 = vpop.f32.mrf.mxu0
  %v375 = vadd.f32 %v74, %v374
  %376 = vmatmul.bf16.gmra.mxu0 %v257
  %v377 = vpop.f32.mrf.mxu0
  %v378 = vadd.f32 %v74, %v377
  %v379 = vpop.f32.mrf.mxu0
  %v380 = vadd.f32 %v74, %v379
  %381 = vmatmul.bf16.gmra.mxu0 %v260
  %v382 = vpop.f32.mrf.mxu0
  %v383 = vadd.f32 %v74, %v382
  %v384 = vpop.f32.mrf.mxu0
  %v385 = vadd.f32 %v74, %v384
  %386 = vmatmul.bf16.gmra.mxu0 %v263
  %v387 = vpop.f32.mrf.mxu0
  %v388 = vadd.f32 %v74, %v387
  %v389 = vpop.f32.mrf.mxu0
  %v390 = vadd.f32 %v74, %v389
  %391 = vmatmul.bf16.gmra.mxu0 %v266
  %v392 = vpop.f32.mrf.mxu0
  %v393 = vadd.f32 %v74, %v392
  %v394 = vpop.f32.mrf.mxu0
  %v395 = vadd.f32 %v74, %v394
  %396 = vmatmul.bf16.gmra.mxu0 %v269
  %v397 = vpop.f32.mrf.mxu0
  %v398 = vadd.f32 %v74, %v397
  %v399 = vpop.f32.mrf.mxu0
  %v400 = vadd.f32 %v74, %v399
  %401 = vmatmul.bf16.gmra.mxu0 %v272
  %v402 = vpop.f32.mrf.mxu0
  %v403 = vadd.f32 %v74, %v402
  %v404 = vpop.f32.mrf.mxu0
  %v405 = vadd.f32 %v74, %v404
  %406 = vmatmul.bf16.gmra.mxu0 %v275
  %v407 = vpop.f32.mrf.mxu0
  %v408 = vadd.f32 %v74, %v407
  %v409 = vpop.f32.mrf.mxu0
  %v410 = vadd.f32 %v74, %v409
  %411 = vmatmul.bf16.gmra.mxu0 %v278
  %v412 = vpop.f32.mrf.mxu0
  %v413 = vadd.f32 %v74, %v412
  %v414 = vpop.f32.mrf.mxu0
  %v415 = vadd.f32 %v74, %v414
  %416 = vmatmul.bf16.gmra.mxu0 %v281
  %v417 = vpop.f32.mrf.mxu0
  %v418 = vadd.f32 %v74, %v417
  %v419 = vpop.f32.mrf.mxu0
  %v420 = vadd.f32 %v74, %v419
  %421 = vmatmul.bf16.gmra.mxu0 %v284
  %v422 = vpop.f32.mrf.mxu0
  %v423 = vadd.f32 %v74, %v422
  %v424 = vpop.f32.mrf.mxu0
  %425 = vdwg.mxu0
  %s426 = sld [smem:[#allocation2]]
  %vm427 = vcmp.ge.f32.partialorder %v303, 0.0
  %vm428 = vcmp.ge.f32.partialorder %v305, 0.0
  %vm429 = vcmp.ge.f32.partialorder %v308, 0.0
  %vm430 = vcmp.ge.f32.partialorder %v310, 0.0
  %vm431 = vcmp.ge.f32.partialorder %v313, 0.0
  %vm432 = vcmp.ge.f32.partialorder %v315, 0.0
  %vm433 = vcmp.ge.f32.partialorder %v318, 0.0
  %vm434 = vcmp.ge.f32.partialorder %v320, 0.0
  %vm435 = vcmp.ge.f32.partialorder %v323, 0.0
  %vm436 = vcmp.ge.f32.partialorder %v325, 0.0
  %vm437 = vcmp.ge.f32.partialorder %v328, 0.0
  %vm438 = vcmp.ge.f32.partialorder %v330, 0.0
  %vm439 = vcmp.ge.f32.partialorder %v333, 0.0
  %vm440 = vcmp.ge.f32.partialorder %v335, 0.0
  %vm441 = vcmp.ge.f32.partialorder %v338, 0.0
  %vm442 = vcmp.ge.f32.partialorder %v340, 0.0
  %vm443 = vcmp.ge.f32.partialorder %v343, 0.0
  %vm444 = vcmp.ge.f32.partialorder %v345, 0.0
  %vm445 = vcmp.ge.f32.partialorder %v348, 0.0
  %vm446 = vcmp.ge.f32.partialorder %v350, 0.0
  %vm447 = vcmp.ge.f32.partialorder %v353, 0.0
  %vm448 = vcmp.ge.f32.partialorder %v355, 0.0
  %vm449 = vcmp.ge.f32.partialorder %v358, 0.0
  %vm450 = vcmp.ge.f32.partialorder %v360, 0.0
  %vm451 = vcmp.ge.f32.partialorder %v363, 0.0
  %vm452 = vcmp.ge.f32.partialorder %v365, 0.0
  %vm453 = vcmp.ge.f32.partialorder %v368, 0.0
  %vm454 = vcmp.ge.f32.partialorder %v370, 0.0
  %vm455 = vcmp.ge.f32.partialorder %v373, 0.0
  %vm456 = vcmp.ge.f32.partialorder %v375, 0.0
  %vm457 = vcmp.ge.f32.partialorder %v378, 0.0
  %vm458 = vcmp.ge.f32.partialorder %v380, 0.0
  %vm459 = vcmp.ge.f32.partialorder %v383, 0.0
  %vm460 = vcmp.ge.f32.partialorder %v385, 0.0
  %vm461 = vcmp.ge.f32.partialorder %v388, 0.0
  %vm462 = vcmp.ge.f32.partialorder %v390, 0.0
  %vm463 = vcmp.ge.f32.partialorder %v393, 0.0
  %vm464 = vcmp.ge.f32.partialorder %v395, 0.0
  %vm465 = vcmp.ge.f32.partialorder %v398, 0.0
  %vm466 = vcmp.ge.f32.partialorder %v400, 0.0
  %vm467 = vcmp.ge.f32.partialorder %v403, 0.0
  %vm468 = vcmp.ge.f32.partialorder %v405, 0.0
  %vm469 = vcmp.ge.f32.partialorder %v408, 0.0
  %vm470 = vcmp.ge.f32.partialorder %v410, 0.0
  %vm471 = vcmp.ge.f32.partialorder %v413, 0.0
  %vm472 = vcmp.ge.f32.partialorder %v415, 0.0
  %vm473 = vcmp.ge.f32.partialorder %v418, 0.0
  %vm474 = vcmp.ge.f32.partialorder %v420, 0.0
  %vm475 = vcmp.ge.f32.partialorder %v423, 0.0
  %v476 = vstv %s426
  %v477 = vmul.f32 %v476, %v303
  %v478 = vmul.f32 %v476, %v305
  %v479 = vmul.f32 %v476, %v308
  %v480 = vmul.f32 %v476, %v310
  %v481 = vmul.f32 %v476, %v313
  %v482 = vmul.f32 %v476, %v315
  %v483 = vmul.f32 %v476, %v318
  %v484 = vmul.f32 %v476, %v320
  %v485 = vmul.f32 %v476, %v323
  %v486 = vmul.f32 %v476, %v325
  %v487 = vmul.f32 %v476, %v328
  %v488 = vmul.f32 %v476, %v330
  %v489 = vmul.f32 %v476, %v333
  %v490 = vmul.f32 %v476, %v335
  %v491 = vmul.f32 %v476, %v338
  %v492 = vmul.f32 %v476, %v340
  %v493 = vmul.f32 %v476, %v343
  %v494 = vmul.f32 %v476, %v345
  %v495 = vmul.f32 %v476, %v348
  %v496 = vmul.f32 %v476, %v350
  %v497 = vmul.f32 %v476, %v353
  %v498 = vmul.f32 %v476, %v355
  %v499 = vmul.f32 %v476, %v358
  %v500 = vmul.f32 %v476, %v360
  %v501 = vmul.f32 %v476, %v363
  %v502 = vmul.f32 %v476, %v365
  %v503 = vmul.f32 %v476, %v368
  %v504 = vmul.f32 %v476, %v370
  %v505 = vmul.f32 %v476, %v373
  %v506 = vmul.f32 %v476, %v375
  %v507 = vmul.f32 %v476, %v378
  %v508 = vmul.f32 %v476, %v380
  %v509 = vmul.f32 %v476, %v383
  %v510 = vmul.f32 %v476, %v385
  %v511 = vmul.f32 %v476, %v388
  %v512 = vmul.f32 %v476, %v390
  %v513 = vmul.f32 %v476, %v393
  %v514 = vmul.f32 %v476, %v395
  %v515 = vmul.f32 %v476, %v398
  %v516 = vmul.f32 %v476, %v400
  %v517 = vmul.f32 %v476, %v403
  %v518 = vmul.f32 %v476, %v405
  %v519 = vmul.f32 %v476, %v408
  %v520 = vmul.f32 %v476, %v410
  %v521 = vmul.f32 %v476, %v413
  %v522 = vmul.f32 %v476, %v415
  %v523 = vmul.f32 %v476, %v418
  %v524 = vmul.f32 %v476, %v420
  %v525 = vmul.f32 %v476, %v423
  %v526 = vsel %vm427, %v303, %v477
  %v527 = vsel %vm428, %v305, %v478
  %v528 = vsel %vm429, %v308, %v479
  %v529 = vsel %vm430, %v310, %v480
  %v530 = vsel %vm431, %v313, %v481
  %v531 = vsel %vm432, %v315, %v482
  %v532 = vsel %vm433, %v318, %v483
  %v533 = vsel %vm434, %v320, %v484
  %v534 = vsel %vm435, %v323, %v485
  %v535 = vsel %vm436, %v325, %v486
  %v536 = vsel %vm437, %v328, %v487
  %v537 = vsel %vm438, %v330, %v488
  %v538 = vsel %vm439, %v333, %v489
  %v539 = vsel %vm440, %v335, %v490
  %v540 = vsel %vm441, %v338, %v491
  %v541 = vsel %vm442, %v340, %v492
  %v542 = vsel %vm443, %v343, %v493
  %v543 = vsel %vm444, %v345, %v494
  %v544 = vsel %vm445, %v348, %v495
  %v545 = vsel %vm446, %v350, %v496
  %v546 = vsel %vm447, %v353, %v497
  %v547 = vsel %vm448, %v355, %v498
  %v548 = vsel %vm449, %v358, %v499
  %v549 = vsel %vm450, %v360, %v500
  %v550 = vsel %vm451, %v363, %v501
  %v551 = vsel %vm452, %v365, %v502
  %v552 = vsel %vm453, %v368, %v503
  %v553 = vsel %vm454, %v370, %v504
  %v554 = vsel %vm455, %v373, %v505
  %v555 = vsel %vm456, %v375, %v506
  %v556 = vsel %vm457, %v378, %v507
  %v557 = vsel %vm458, %v380, %v508
  %v558 = vsel %vm459, %v383, %v509
  %v559 = vsel %vm460, %v385, %v510
  %v560 = vsel %vm461, %v388, %v511
  %v561 = vsel %vm462, %v390, %v512
  %v562 = vsel %vm463, %v393, %v513
  %v563 = vsel %vm464, %v395, %v514
  %v564 = vsel %vm465, %v398, %v515
  %v565 = vsel %vm466, %v400, %v516
  %v566 = vsel %vm467, %v403, %v517
  %v567 = vsel %vm468, %v405, %v518
  %v568 = vsel %vm469, %v408, %v519
  %v569 = vsel %vm470, %v410, %v520
  %v570 = vsel %vm471, %v413, %v521
  %v571 = vsel %vm472, %v415, %v522
  %v572 = vsel %vm473, %v418, %v523
  %v573 = vsel %vm474, %v420, %v524
  %v574 = vsel %vm475, %v423, %v525
  %vm575 = vcmask 80896
  %576 = vst.msk [vmem:[%s4] sm:$0xff] %vm575, %v526
  %577 = vst.msk [vmem:[%s4 + $0x8] sm:$0xff] %vm575, %v527
  %578 = vst.msk [vmem:[%s4 + $0x10] sm:$0xff] %vm575, %v528
  %579 = vst.msk [vmem:[%s4 + $0x18] sm:$0xff] %vm575, %v529
  %580 = vst.msk [vmem:[%s4 + $0x20] sm:$0xff] %vm575, %v530
  %581 = vst.msk [vmem:[%s4 + $0x28] sm:$0xff] %vm575, %v531
  %582 = vst.msk [vmem:[%s4 + $0x30] sm:$0xff] %vm575, %v532
  %583 = vst.msk [vmem:[%s4 + $0x38] sm:$0xff] %vm575, %v533
  %584 = vst.msk [vmem:[%s4 + $0x40] sm:$0xff] %vm575, %v534
  %585 = vst.msk [vmem:[%s4 + $0x48] sm:$0xff] %vm575, %v535
  %586 = vst.msk [vmem:[%s4 + $0x50] sm:$0xff] %vm575, %v536
  %587 = vst.msk [vmem:[%s4 + $0x58] sm:$0xff] %vm575, %v537
  %588 = vst.msk [vmem:[%s4 + $0x60] sm:$0xff] %vm575, %v538
  %589 = vst.msk [vmem:[%s4 + $0x68] sm:$0xff] %vm575, %v539
  %590 = vst.msk [vmem:[%s4 + $0x70] sm:$0xff] %vm575, %v540
  %591 = vst.msk [vmem:[%s4 + $0x78] sm:$0xff] %vm575, %v541
  %592 = vst.msk [vmem:[%s4 + $0x80] sm:$0xff] %vm575, %v542
  %593 = vst.msk [vmem:[%s4 + $0x88] sm:$0xff] %vm575, %v543
  %594 = vst.msk [vmem:[%s4 + $0x90] sm:$0xff] %vm575, %v544
  %595 = vst.msk [vmem:[%s4 + $0x98] sm:$0xff] %vm575, %v545
  %596 = vst.msk [vmem:[%s4 + $0xa0] sm:$0xff] %vm575, %v546
  %597 = vst.msk [vmem:[%s4 + $0xa8] sm:$0xff] %vm575, %v547
  %598 = vst.msk [vmem:[%s4 + $0xb0] sm:$0xff] %vm575, %v548
  %599 = vst.msk [vmem:[%s4 + $0xb8] sm:$0xff] %vm575, %v549
  %600 = vst.msk [vmem:[%s4 + $0xc0] sm:$0xff] %vm575, %v550
  %601 = vst.msk [vmem:[%s4 + $0xc8] sm:$0xff] %vm575, %v551
  %602 = vst.msk [vmem:[%s4 + $0xd0] sm:$0xff] %vm575, %v552
  %603 = vst.msk [vmem:[%s4 + $0xd8] sm:$0xff] %vm575, %v553
  %604 = vst.msk [vmem:[%s4 + $0xe0] sm:$0xff] %vm575, %v554
  %605 = vst.msk [vmem:[%s4 + $0xe8] sm:$0xff] %vm575, %v555
  %606 = vst.msk [vmem:[%s4 + $0xf0] sm:$0xff] %vm575, %v556
  %607 = vst.msk [vmem:[%s4 + $0xf8] sm:$0xff] %vm575, %v557
  %608 = vst.msk [vmem:[%s4 + $0x100] sm:$0xff] %vm575, %v558
  %609 = vst.msk [vmem:[%s4 + $0x108] sm:$0xff] %vm575, %v559
  %610 = vst.msk [vmem:[%s4 + $0x110] sm:$0xff] %vm575, %v560
  %611 = vst.msk [vmem:[%s4 + $0x118] sm:$0xff] %vm575, %v561
  %612 = vst.msk [vmem:[%s4 + $0x120] sm:$0xff] %vm575, %v562
  %613 = vst.msk [vmem:[%s4 + $0x128] sm:$0xff] %vm575, %v563
  %614 = vst.msk [vmem:[%s4 + $0x130] sm:$0xff] %vm575, %v564
  %615 = vst.msk [vmem:[%s4 + $0x138] sm:$0xff] %vm575, %v565
  %616 = vst.msk [vmem:[%s4 + $0x140] sm:$0xff] %vm575, %v566
  %617 = vst.msk [vmem:[%s4 + $0x148] sm:$0xff] %vm575, %v567
  %618 = vst.msk [vmem:[%s4 + $0x150] sm:$0xff] %vm575, %v568
  %619 = vst.msk [vmem:[%s4 + $0x158] sm:$0xff] %vm575, %v569
  %620 = vst.msk [vmem:[%s4 + $0x160] sm:$0xff] %vm575, %v570
  %621 = vst.msk [vmem:[%s4 + $0x168] sm:$0xff] %vm575, %v571
  %622 = vst.msk [vmem:[%s4 + $0x170] sm:$0xff] %vm575, %v572
  %623 = vst.msk [vmem:[%s4 + $0x178] sm:$0xff] %vm575, %v573
  %624 = vst.msk [vmem:[%s4 + $0x180] sm:$0xff] %vm575, %v574
  // Predicated region
  $region18: #{tpu_custom_call.1} parent=0 // pred_check
    _
  $region19: #{tpu_custom_call.1} parent=0 // pred_check_branch
    %626 = sbr.rel (0) target = $region21
  $region20: #{tpu_custom_call.1} parent=0 // pred_region
    _
  $region21: #{tpu_custom_call.1} parent=0 // pred_fallthru
    _
  // Predicated region
  $region22: #{tpu_custom_call.1} parent=0 // pred_check
    _
  $region23: #{tpu_custom_call.1} parent=0 // pred_check_branch
    %628 = sbr.rel (0) target = $region25
  $region24: #{tpu_custom_call.1} parent=0 // pred_region
    _
  $region25: #{tpu_custom_call.1} parent=0 // pred_fallthru
    _

</llo_original>
